<compile_context>
chip_gen: v7x
topology: tpu7x:2x2x1
jax: 0.10.0
libtpu: 0.0.40
codegen_flags: <defaults>
</compile_context>

<pallas_src>
import jax
import jax.numpy as jnp
from jax.experimental import pallas as pl
from jax.experimental.pallas import tpu as pltpu


IN_DIM = 100
H1 = 128
H2 = 64
H3 = 64
OUT_DIM = 2
OUT_PAD = 128          # lane-dense output slab width (multiple of 128)


def _round_up(n, m):
    return ((n + m - 1) // m) * m


def _mlp_kernel(x_ref, w1_ref, b1_ref, w2_ref, b2_ref, w34_ref, b34_ref, o_ref):
    x = x_ref[...]                                                     # (TB, IN_DIM) bf16

    # Layer 1 + ReLU (Dropout = identity in eval mode)
    h = jnp.dot(x, w1_ref[...], preferred_element_type=jnp.float32) + b1_ref[...]
    h = jnp.maximum(h, 0.0)

    # Layer 2 + ReLU (Dropout = identity in eval mode)
    h = h.astype(w2_ref.dtype)
    h = jnp.dot(h, w2_ref[...], preferred_element_type=jnp.float32) + b2_ref[...]
    h = jnp.maximum(h, 0.0)

    # Fused layers 3+4 (no nonlinearity between them in the module), lane-dense output
    h = h.astype(w34_ref.dtype)
    h = jnp.dot(h, w34_ref[...], preferred_element_type=jnp.float32) + b34_ref[...]

    o_ref[...] = h.astype(o_ref.dtype)                                 # (TB, OUT_PAD) f32


def prepare_params(params, compute_dtype=jnp.bfloat16):
    """One-time parameter prep: dtype cast, fuse layers 3+4, pad head to 128 lanes."""
    f32 = jnp.float32
    w1 = params["w1"].astype(compute_dtype)
    b1 = params["b1"].astype(f32)
    w2 = params["w2"].astype(compute_dtype)
    b2 = params["b2"].astype(f32)

    # Exact fusion: Linear(64,64) followed directly by Linear(64,2) (no activation).
    w34 = params["w3"].astype(f32) @ params["w4"].astype(f32)                  # (64, 2)
    b34 = params["b3"].astype(f32) @ params["w4"].astype(f32) + params["b4"].astype(f32)

    # Zero-pad the head to a lane-dense 128-wide slab (unmasked vst on the output).
    w34p = jnp.zeros((H3, OUT_PAD), f32).at[:, :OUT_DIM].set(w34).astype(compute_dtype)
    b34p = jnp.zeros((1, OUT_PAD), f32).at[:, :OUT_DIM].set(b34)

    return dict(w1=w1, b1=b1, w2=w2, b2=b2, w34=w34p, b34=b34p)


def attack_net_linear_forward(x, prepared, *, tile_b=256):
    """x: (B, IN_DIM). prepared: output of prepare_params(). Returns (B, OUT_DIM) f32."""
    B, D = x.shape
    assert D == IN_DIM
    compute_dtype = prepared["w1"].dtype

    # Tile size: multiple of 128 (fills MXU rows, works for f32/bf16 sublane packing),
    # capped near B so small batches do not over-pad. Ragged B -> zero-pad.
    tile_b = min(_round_up(tile_b, 128), _round_up(B, 128))
    b_pad = _round_up(B, tile_b)

    x_p = x.astype(compute_dtype)
    if b_pad != B:
        x_p = jnp.pad(x_p, ((0, b_pad - B), (0, 0)))

    grid = (b_pad // tile_b,)
    full = lambda i: (0, 0)   # weights/biases: same single block every grid step
    # (Possible micro-opt: pipeline_mode=pl.Buffered(1) on the constant-index weight
    #  specs to avoid double-buffering their VMEM; skipped for portability.)

    out = pl.pallas_call(
        _mlp_kernel,
        out_shape=jax.ShapeDtypeStruct((b_pad, OUT_PAD), jnp.float32),
        grid_spec=pltpu.PrefetchScalarGridSpec(
            num_scalar_prefetch=0,
            grid=grid,
            in_specs=[
                pl.BlockSpec((tile_b, IN_DIM), lambda i: (i, 0)),   # x tile
                pl.BlockSpec((IN_DIM, H1), full),
                pl.BlockSpec((1, H1), full),
                pl.BlockSpec((H1, H2), full),
                pl.BlockSpec((1, H2), full),
                pl.BlockSpec((H3, OUT_PAD), full),
                pl.BlockSpec((1, OUT_PAD), full),
            ],
            out_specs=pl.BlockSpec((tile_b, OUT_PAD), lambda i: (i, 0)),
        ),
        compiler_params=pltpu.CompilerParams(
            dimension_semantics=("parallel",),   # batch tiles shard across v7x TCs
        ),
    )(x_p, prepared["w1"], prepared["b1"], prepared["w2"], prepared["b2"],
      prepared["w34"], prepared["b34"])

    return out[:B, :OUT_DIM]


def init_params(key):
    """Deterministic synthetic parameters with the shapes of AttackNetLinear."""
    ks = jax.random.split(key, 8)

    def lin(kw, kb, fan_in, fan_out):
        bound = 1.0 / jnp.sqrt(jnp.float32(fan_in))
        w = jax.random.uniform(kw, (fan_in, fan_out), jnp.float32, -bound, bound)
        b = jax.random.uniform(kb, (1, fan_out), jnp.float32, -bound, bound)
        return w, b

    w1, b1 = lin(ks[0], ks[1], IN_DIM, H1)
    w2, b2 = lin(ks[2], ks[3], H1, H2)
    w3, b3 = lin(ks[4], ks[5], H2, H3)
    w4, b4 = lin(ks[6], ks[7], H3, OUT_DIM)
    return dict(w1=w1, b1=b1, w2=w2, b2=b2, w3=w3, b3=b3, w4=w4, b4=b4)


def _reference_original_f32(x, p):
    """Original module semantics (eval mode), f32, unfused."""
    h = jnp.maximum(x @ p["w1"] + p["b1"], 0.0)
    h = jnp.maximum(h @ p["w2"] + p["b2"], 0.0)
    h = h @ p["w3"] + p["b3"]
    h = h @ p["w4"] + p["b4"]
    return h


def _reference_kernel_precision(x, prep):
    """Pure-JAX reference at the exact same (bf16-rounded, fused) precision as the kernel."""
    cd = prep["w1"].dtype
    hp = jax.lax.Precision.HIGHEST
    xb = x.astype(cd).astype(jnp.float32)
    w1 = prep["w1"].astype(jnp.float32)
    w2 = prep["w2"].astype(jnp.float32)
    w34 = prep["w34"].astype(jnp.float32)
    h = jnp.maximum(jnp.dot(xb, w1, precision=hp) + prep["b1"], 0.0)
    h = h.astype(cd).astype(jnp.float32)
    h = jnp.maximum(jnp.dot(h, w2, precision=hp) + prep["b2"], 0.0)
    h = h.astype(cd).astype(jnp.float32)
    h = jnp.dot(h, w34, precision=hp) + prep["b34"]
    return h[:, :OUT_DIM]


if __name__ == "__main__":
    key = jax.random.PRNGKey(0)
    kx, kx2, kp = jax.random.split(key, 3)

    params = init_params(kp)
    prepared = prepare_params(params)

    # Small batch (single tile, padded internally).
    B = 8
    x = jax.random.normal(kx, (B, IN_DIM), jnp.float32)
    out = jax.block_until_ready(attack_net_linear_forward(x, prepared))
    assert out.shape == (B, OUT_DIM)
    ref_eq = _reference_kernel_precision(x, prepared)
    assert jnp.allclose(out, ref_eq, atol=1e-3, rtol=1e-3), "mismatch vs equal-precision ref"
    ref_f32 = _reference_original_f32(x, params)
    assert jnp.allclose(out, ref_f32, atol=5e-2, rtol=5e-2), "mismatch vs f32 module semantics"

    # Ragged, multi-tile batch (exercises padding + multi-step grid).
    B2 = 300
    x2 = jax.random.normal(kx2, (B2, IN_DIM), jnp.float32)
    out2 = jax.block_until_ready(attack_net_linear_forward(x2, prepared))
    assert out2.shape == (B2, OUT_DIM)
    ref2 = _reference_kernel_precision(x2, prepared)
    assert jnp.allclose(out2, ref2, atol=1e-3, rtol=1e-3), "mismatch on ragged batch"

    print("KERNEL_OK")
</pallas_src>

<mosaic_0001>
module attributes {stable_mosaic.version = 11 : i64} {
  func.func @_mlp_kernel(%arg0: i32, %arg1: memref<128x100xbf16, #tpu.memory_space<vmem>>, %arg2: memref<100x128xbf16, #tpu.memory_space<vmem>>, %arg3: memref<1x128xf32, #tpu.memory_space<vmem>>, %arg4: memref<128x64xbf16, #tpu.memory_space<vmem>>, %arg5: memref<1x64xf32, #tpu.memory_space<vmem>>, %arg6: memref<64x128xbf16, #tpu.memory_space<vmem>>, %arg7: memref<1x128xf32, #tpu.memory_space<vmem>>, %arg8: memref<128x128xf32, #tpu.memory_space<vmem>>) attributes {dimension_semantics = [#tpu.dimension_semantics<parallel>], iteration_bounds = array<i64: 1>, scalar_prefetch = 0 : i64, scratch_operands = 0 : i64, tpu.core_type = #tpu.core_type<tc>, window_params = [{transform_indices = @transform_0, window_bounds = array<i64: 128, 100>}, {pipeline_mode = #tpu.pipeline_mode<synchronous>, transform_indices = @transform_1, window_bounds = array<i64: 100, 128>}, {pipeline_mode = #tpu.pipeline_mode<synchronous>, transform_indices = @transform_2, window_bounds = array<i64: 1, 128>}, {pipeline_mode = #tpu.pipeline_mode<synchronous>, transform_indices = @transform_3, window_bounds = array<i64: 128, 64>}, {pipeline_mode = #tpu.pipeline_mode<synchronous>, transform_indices = @transform_4, window_bounds = array<i64: 1, 64>}, {pipeline_mode = #tpu.pipeline_mode<synchronous>, transform_indices = @transform_5, window_bounds = array<i64: 64, 128>}, {pipeline_mode = #tpu.pipeline_mode<synchronous>, transform_indices = @transform_6, window_bounds = array<i64: 1, 128>}, {transform_indices = @transform_7, window_bounds = array<i64: 128, 128>}]} {
    %c0 = arith.constant 0 : index
    %c0_0 = arith.constant 0 : index
    %0 = vector.load %arg1[%c0, %c0_0] : memref<128x100xbf16, #tpu.memory_space<vmem>>, vector<128x100xbf16>
    %c0_1 = arith.constant 0 : index
    %c0_2 = arith.constant 0 : index
    %1 = vector.load %arg2[%c0_1, %c0_2] : memref<100x128xbf16, #tpu.memory_space<vmem>>, vector<100x128xbf16>
    %cst = arith.constant dense<0.000000e+00> : vector<128x128xf32>
    %2 = tpu.matmul %0, %1, %cst {dimension_numbers = #tpu.dot_dimension_numbers<[1], [0], [0], [1], [0, 0, 1, 1], [], []>} : vector<128x100xbf16>, vector<100x128xbf16>, vector<128x128xf32> -> vector<128x128xf32>
    %c0_3 = arith.constant 0 : index
    %c0_4 = arith.constant 0 : index
    %3 = vector.load %arg3[%c0_3, %c0_4] : memref<1x128xf32, #tpu.memory_space<vmem>>, vector<1x128xf32>
    %4 = vector.broadcast %3 : vector<1x128xf32> to vector<128x128xf32>
    %5 = arith.addf %2, %4 : vector<128x128xf32>
    %cst_5 = arith.constant 0.000000e+00 : f32
    %6 = vector.broadcast %cst_5 : f32 to vector<128x128xf32>
    %7 = arith.maximumf %5, %6 : vector<128x128xf32>
    %8 = arith.truncf %7 : vector<128x128xf32> to vector<128x128xbf16>
    %c0_6 = arith.constant 0 : index
    %c0_7 = arith.constant 0 : index
    %9 = vector.load %arg4[%c0_6, %c0_7] : memref<128x64xbf16, #tpu.memory_space<vmem>>, vector<128x64xbf16>
    %cst_8 = arith.constant dense<0.000000e+00> : vector<128x64xf32>
    %10 = tpu.matmul %8, %9, %cst_8 {dimension_numbers = #tpu.dot_dimension_numbers<[1], [0], [0], [1], [0, 0, 1, 1], [], []>} : vector<128x128xbf16>, vector<128x64xbf16>, vector<128x64xf32> -> vector<128x64xf32>
    %c0_9 = arith.constant 0 : index
    %c0_10 = arith.constant 0 : index
    %11 = vector.load %arg5[%c0_9, %c0_10] : memref<1x64xf32, #tpu.memory_space<vmem>>, vector<1x64xf32>
    %12 = vector.broadcast %11 : vector<1x64xf32> to vector<128x64xf32>
    %13 = arith.addf %10, %12 : vector<128x64xf32>
    %cst_11 = arith.constant 0.000000e+00 : f32
    %14 = vector.broadcast %cst_11 : f32 to vector<128x64xf32>
    %15 = arith.maximumf %13, %14 : vector<128x64xf32>
    %16 = arith.truncf %15 : vector<128x64xf32> to vector<128x64xbf16>
    %c0_12 = arith.constant 0 : index
    %c0_13 = arith.constant 0 : index
    %17 = vector.load %arg6[%c0_12, %c0_13] : memref<64x128xbf16, #tpu.memory_space<vmem>>, vector<64x128xbf16>
    %cst_14 = arith.constant dense<0.000000e+00> : vector<128x128xf32>
    %18 = tpu.matmul %16, %17, %cst_14 {dimension_numbers = #tpu.dot_dimension_numbers<[1], [0], [0], [1], [0, 0, 1, 1], [], []>} : vector<128x64xbf16>, vector<64x128xbf16>, vector<128x128xf32> -> vector<128x128xf32>
    %c0_15 = arith.constant 0 : index
    %c0_16 = arith.constant 0 : index
    %19 = vector.load %arg7[%c0_15, %c0_16] : memref<1x128xf32, #tpu.memory_space<vmem>>, vector<1x128xf32>
    %20 = vector.broadcast %19 : vector<1x128xf32> to vector<128x128xf32>
    %21 = arith.addf %18, %20 : vector<128x128xf32>
    %c0_17 = arith.constant 0 : index
    %c0_18 = arith.constant 0 : index
    %22 = vector.load %arg8[%c0_17, %c0_18] : memref<128x128xf32, #tpu.memory_space<vmem>>, vector<128x128xf32>
    tpu.vector_store %arg8[%c0_17, %c0_18], %21 {strides = array<i32>} : memref<128x128xf32, #tpu.memory_space<vmem>>, vector<128x128xf32>,
    return
  }
  func.func @transform_0(%arg0: i32) -> (i32, i32) {
    %c0_i32 = arith.constant 0 : i32
    %c0_i32_0 = arith.constant 0 : i32
    return %arg0, %c0_i32 : i32, i32
  }
  func.func @transform_1(%arg0: i32) -> (i32, i32) {
    %c0_i32 = arith.constant 0 : i32
    %c0_i32_0 = arith.constant 0 : i32
    %c0_i32_1 = arith.constant 0 : i32
    return %c0_i32, %c0_i32_0 : i32, i32
  }
  func.func @transform_2(%arg0: i32) -> (i32, i32) {
    %c0_i32 = arith.constant 0 : i32
    %c0_i32_0 = arith.constant 0 : i32
    %c0_i32_1 = arith.constant 0 : i32
    return %c0_i32, %c0_i32_0 : i32, i32
  }
  func.func @transform_3(%arg0: i32) -> (i32, i32) {
    %c0_i32 = arith.constant 0 : i32
    %c0_i32_0 = arith.constant 0 : i32
    %c0_i32_1 = arith.constant 0 : i32
    return %c0_i32, %c0_i32_0 : i32, i32
  }
  func.func @transform_4(%arg0: i32) -> (i32, i32) {
    %c0_i32 = arith.constant 0 : i32
    %c0_i32_0 = arith.constant 0 : i32
    %c0_i32_1 = arith.constant 0 : i32
    return %c0_i32, %c0_i32_0 : i32, i32
  }
  func.func @transform_5(%arg0: i32) -> (i32, i32) {
    %c0_i32 = arith.constant 0 : i32
    %c0_i32_0 = arith.constant 0 : i32
    %c0_i32_1 = arith.constant 0 : i32
    return %c0_i32, %c0_i32_0 : i32, i32
  }
  func.func @transform_6(%arg0: i32) -> (i32, i32) {
    %c0_i32 = arith.constant 0 : i32
    %c0_i32_0 = arith.constant 0 : i32
    %c0_i32_1 = arith.constant 0 : i32
    return %c0_i32, %c0_i32_0 : i32, i32
  }
  func.func @transform_7(%arg0: i32) -> (i32, i32) {
    %c0_i32 = arith.constant 0 : i32
    %c0_i32_0 = arith.constant 0 : i32
    return %arg0, %c0_i32 : i32, i32
  }
}

</mosaic_0001>

<llo_original>
// kernel: tpu_custom_call.1
$region0: #{tpu_custom_call.1}
  #allocation0 [shape = 'u32[]', space=smem, size = 0x4, offset = 0x4, fixed_abs, tag = 'smem constant byte address 0x4 - core index']
  #allocation1 [shape = 'u32[144,128]{1,0:T(1,128)}', space=vmem, size = 0x12000, scoped, tag = 'internal scratch']
  %s0 = inlined_call_operand.vmem [shape: bf16[128,100], index: 0, kind: input, shape index: {}]
  %s1 = inlined_call_operand.vmem [shape: bf16[100,128], index: 1, kind: input, shape index: {}]
  %s2 = inlined_call_operand.vmem [shape: f32[1,128], index: 2, kind: input, shape index: {}]
  %s3 = inlined_call_operand.vmem [shape: bf16[128,64], index: 3, kind: input, shape index: {}]
  %s4 = inlined_call_operand.vmem [shape: f32[1,64], index: 4, kind: input, shape index: {}]
  %s5 = inlined_call_operand.vmem [shape: bf16[64,128], index: 5, kind: input, shape index: {}]
  %s6 = inlined_call_operand.vmem [shape: f32[1,128], index: 6, kind: input, shape index: {}]
  %s7 = inlined_call_operand.hbm [shape: f32[128,128], index: 7, kind: output, shape index: {}]
  %s8 = sld [smem:[#allocation0]]
  $region38: #{tpu_custom_call.1} parent=0
    _
  %s10 = ssub.s32 1, %s8
  %s11 = scalar_select 0, %s10, %s8
  $region1: #{tpu_custom_call.1} parent=0
    #allocation2 [shape = 'u8[65536]{0}', space=vmem, size = 0x10000, scoped, tag = 'output window, operand 0, single buffered']
    #allocation3 [shape = 's32[1]{0}', space=sflag, size = 0x4, scoped, tag = 'scoped memory for tpu_custom_call.1']
    %12 = vsyncpa [#allocation3], 0
    // Predicated region
    $region2: #{tpu_custom_call.1} parent=1 // pred_check
      _
    $region3: #{tpu_custom_call.1} parent=1 // pred_check_branch
      %14 = sbr.rel (0) target = $region5
    $region4: #{tpu_custom_call.1} parent=1 // pred_region
      _
    $region5: #{tpu_custom_call.1} parent=1 // pred_fallthru
      _
    // Predicated region
    $region6: #{tpu_custom_call.1} parent=1 // pred_check
      _
    $region7: #{tpu_custom_call.1} parent=1 // pred_check_branch
      %16 = sbr.rel (0) target = $region9
    $region8: #{tpu_custom_call.1} parent=1 // pred_region
      _
    $region9: #{tpu_custom_call.1} parent=1 // pred_fallthru
      _
    // Predicated region
    $region10: #{tpu_custom_call.1} parent=1 // pred_check
      _
    $region11: #{tpu_custom_call.1} parent=1 // pred_check_branch
      %18 = sbr.rel (0) target = $region13
    $region12: #{tpu_custom_call.1} parent=1 // pred_region
      _
    $region13: #{tpu_custom_call.1} parent=1 // pred_fallthru
      _
    // Predicated region
    $region14: #{tpu_custom_call.1} parent=1 // pred_check
      _
    $region15: #{tpu_custom_call.1} parent=1 // pred_check_branch
      %20 = sbr.rel (0) target = $region17
    $region16: #{tpu_custom_call.1} parent=1 // pred_region
      _
    $region17: #{tpu_custom_call.1} parent=1 // pred_fallthru
      _
    // Predicated region
    $region18: #{tpu_custom_call.1} parent=1 // pred_check
      _
    $region19: #{tpu_custom_call.1} parent=1 // pred_check_branch
      %22 = sbr.rel (0) target = $region21
    $region20: #{tpu_custom_call.1} parent=1 // pred_region
      _
    $region21: #{tpu_custom_call.1} parent=1 // pred_fallthru
      _
    // Predicated region
    $region22: #{tpu_custom_call.1} parent=1 // pred_check
      _
    $region23: #{tpu_custom_call.1} parent=1 // pred_check_branch
      %24 = sbr.rel (0) target = $region25
    $region24: #{tpu_custom_call.1} parent=1 // pred_region
      _
    $region25: #{tpu_custom_call.1} parent=1 // pred_fallthru
      _
    // Predicated region
    $region26: #{tpu_custom_call.1} parent=1 // pred_check
      _
    $region27: #{tpu_custom_call.1} parent=1 // pred_check_branch
      %26 = sbr.rel (0) target = $region29
    $region28: #{tpu_custom_call.1} parent=1 // pred_region
      _
    $region29: #{tpu_custom_call.1} parent=1 // pred_fallthru
      _
    %v28 = vld [vmem:[%s0] sm:$0xf]
    %v29 = vld [vmem:[%s0 + $0x4] sm:$0xf]
    %v30 = vld [vmem:[%s0 + $0x8] sm:$0xf]
    %v31 = vld [vmem:[%s0 + $0xc] sm:$0xf]
    %v32 = vld [vmem:[%s0 + $0x10] sm:$0xf]
    %v33 = vld [vmem:[%s0 + $0x14] sm:$0xf]
    %v34 = vld [vmem:[%s0 + $0x18] sm:$0xf]
    %v35 = vld [vmem:[%s0 + $0x1c] sm:$0xf]
    %v36 = vld [vmem:[%s0 + $0x20] sm:$0xf]
    %v37 = vld [vmem:[%s0 + $0x24] sm:$0xf]
    %v38 = vld [vmem:[%s0 + $0x28] sm:$0xf]
    %v39 = vld [vmem:[%s0 + $0x2c] sm:$0xf]
    %v40 = vld [vmem:[%s0 + $0x30] sm:$0xf]
    %v41 = vld [vmem:[%s0 + $0x34] sm:$0xf]
    %v42 = vld [vmem:[%s0 + $0x38] sm:$0xf]
    %v43 = vld [vmem:[%s0 + $0x3c] sm:$0xf]
    %v44 = vld [vmem:[%s1] sm:$0xf]
    %v45 = vld [vmem:[%s1 + $0x4] sm:$0xf]
    %v46 = vld [vmem:[%s1 + $0x8] sm:$0xf]
    %v47 = vld [vmem:[%s1 + $0xc] sm:$0xf]
    %v48 = vld [vmem:[%s1 + $0x10] sm:$0xf]
    %v49 = vld [vmem:[%s1 + $0x14] sm:$0xf]
    %v50 = vld [vmem:[%s1 + $0x18] sm:$0xf]
    %v51 = vld [vmem:[%s1 + $0x1c] sm:$0xf]
    %v52 = vld [vmem:[%s1 + $0x20] sm:$0xf]
    %v53 = vld [vmem:[%s1 + $0x24] sm:$0xf]
    %v54 = vld [vmem:[%s1 + $0x28] sm:$0xf]
    %v55 = vld [vmem:[%s1 + $0x2c] sm:$0xf]
    %v56 = vld [vmem:[%s1 + $0x30] sm:$0x3]
    %v57 = vld [vmem:[%s2] sm:$0x1]
    %v59 = vlaneseq
    %v60 = vshrl.u32 %v59, 7
    %v61 = vsub.s32 0, %v60
    %v62 = vrot.slane %v57, %v61
    %v80 = vunpack.c.l.b16 %v28
    %v81 = vunpack.c.l.b16 %v29
    %v82 = vunpack.c.l.b16 %v30
    %v83 = vunpack.c.l.b16 %v31
    %v84 = vunpack.c.l.b16 %v32
    %v85 = vunpack.c.l.b16 %v33
    %v86 = vunpack.c.l.b16 %v34
    %v87 = vunpack.c.l.b16 %v35
    %v88 = vunpack.c.l.b16 %v36
    %v89 = vunpack.c.l.b16 %v37
    %v90 = vunpack.c.l.b16 %v38
    %v91 = vunpack.c.l.b16 %v39
    %v92 = vunpack.c.l.b16 %v40
    %v93 = vunpack.c.l.b16 %v41
    %v94 = vunpack.c.l.b16 %v42
    %v95 = vunpack.c.l.b16 %v43
    %v96 = vpack.c.b16 %v81, %v80
    %v97 = vpack.c.b16 %v83, %v82
    %v98 = vpack.c.b16 %v85, %v84
    %v99 = vpack.c.b16 %v87, %v86
    %v100 = vpack.c.b16 %v89, %v88
    %v101 = vpack.c.b16 %v91, %v90
    %v102 = vpack.c.b16 %v93, %v92
    %v103 = vpack.c.b16 %v95, %v94
    %v117 = vunpack.c.l.b16 %v44
    %v118 = vunpack.c.l.b16 %v45
    %v119 = vunpack.c.l.b16 %v46
    %v120 = vunpack.c.l.b16 %v47
    %v121 = vunpack.c.l.b16 %v48
    %v122 = vunpack.c.l.b16 %v49
    %v123 = vunpack.c.l.b16 %v50
    %v124 = vunpack.c.l.b16 %v51
    %v125 = vunpack.c.l.b16 %v52
    %v126 = vunpack.c.l.b16 %v53
    %v127 = vunpack.c.l.b16 %v54
    %v128 = vunpack.c.l.b16 %v55
    %v129 = vunpack.c.l.b16 %v56
    %v130 = vpack.c.b16 %v118, %v117
    %v131 = vpack.c.b16 %v120, %v119
    %v132 = vpack.c.b16 %v122, %v121
    %v133 = vpack.c.b16 %v124, %v123
    %v134 = vpack.c.b16 %v126, %v125
    %v135 = vpack.c.b16 %v128, %v127
    %v136 = vpack.c.b16 %v129, %v129
    %vm143 = vcmask 818176
    %v145 = vsel %vm143, %v96, 0
    %v148 = vsel %vm143, %v97, 0
    %v151 = vsel %vm143, %v98, 0
    %v154 = vsel %vm143, %v99, 0
    %v157 = vsel %vm143, %v100, 0
    %v160 = vsel %vm143, %v101, 0
    %v163 = vsel %vm143, %v102, 0
    %v166 = vsel %vm143, %v103, 0
    %vm168 = vcmask 1041408
    %v170 = vsel %vm168, %v136, 0
    %172 = vmatprep.subr.bf16.mxu0 0
    %173 = vmatpush1.bf16.msra.mxu0 %v130
    %174 = vmatprep.subr.bf16.mxu0 0
    %175 = vmatpush1.bf16.msra.mxu0 %v131
    %176 = vmatprep.subr.bf16.mxu0 0
    %177 = vmatpush1.bf16.msra.mxu0 %v132
    %178 = vmatprep.subr.bf16.mxu0 0
    %179 = vmatpush1.bf16.msra.mxu0 %v133
    %180 = vmatprep.subr.bf16.mxu0 0
    %181 = vmatpush1.bf16.msra.mxu0 %v134
    %182 = vmatprep.subr.bf16.mxu0 0
    %183 = vmatpush1.bf16.msra.mxu0 %v135
    %184 = vmatprep.subr.bf16.mxu0 0
    %185 = vmatpush1.bf16.msra.mxu0 %v170
    %186 = vmatprep.subr.bf16.mxu0 0
    %187 = vmatpush1.bf16.msra.mxu0 0
    %188 = vmatprep.subr.bf16.mxu0 0
    %189 = vmatpush1.bf16.msra.mxu0 0
    %190 = vmatprep.subr.bf16.mxu0 0
    %191 = vmatpush1.bf16.msra.mxu0 0
    %192 = vmatprep.subr.bf16.mxu0 0
    %193 = vmatpush1.bf16.msra.mxu0 0
    %194 = vmatprep.subr.bf16.mxu0 0
    %195 = vmatpush1.bf16.msra.mxu0 0
    %196 = vmatprep.subr.bf16.mxu0 0
    %197 = vmatpush1.bf16.msra.mxu0 0
    %198 = vmatprep.subr.bf16.mxu0 0
    %199 = vmatpush1.bf16.msra.mxu0 0
    %200 = vmatprep.subr.bf16.mxu0 0
    %201 = vmatpush1.bf16.msra.mxu0 0
    %202 = vmatprep.subr.bf16.mxu0 0
    %203 = vmatpush1.bf16.msra.mxu0 0
    %204 = vmatprep.mubr.bf16.mxu0 0
    %205 = vmatmul.mubr.bf16.gmra.mrb[0].mxu0 %v145
    %v206 = vpop.f32.mrb[0].mxu0
    %v207 = vadd.f32 %v62, %v206
    %v208 = vpop.f32.mrb[0].mxu0
    %v209 = vpop.f32.mrb[0].mxu0
    %v210 = vadd.f32 %v62, %v209
    %v211 = vpop.f32.mrb[0].mxu0
    %212 = vmatprep.mubr.bf16.mxu0 0
    %213 = vmatmul.mubr.bf16.gmra.mrb[0].mxu0 %v148
    %v214 = vpop.f32.mrb[0].mxu0
    %v215 = vadd.f32 %v62, %v214
    %v216 = vpop.f32.mrb[0].mxu0
    %v217 = vpop.f32.mrb[0].mxu0
    %v218 = vadd.f32 %v62, %v217
    %v219 = vpop.f32.mrb[0].mxu0
    %220 = vmatprep.mubr.bf16.mxu0 0
    %221 = vmatmul.mubr.bf16.gmra.mrb[0].mxu0 %v151
    %v222 = vpop.f32.mrb[0].mxu0
    %v223 = vadd.f32 %v62, %v222
    %v224 = vpop.f32.mrb[0].mxu0
    %v225 = vpop.f32.mrb[0].mxu0
    %v226 = vadd.f32 %v62, %v225
    %v227 = vpop.f32.mrb[0].mxu0
    %228 = vmatprep.mubr.bf16.mxu0 0
    %229 = vmatmul.mubr.bf16.gmra.mrb[0].mxu0 %v154
    %v230 = vpop.f32.mrb[0].mxu0
    %v231 = vadd.f32 %v62, %v230
    %v232 = vpop.f32.mrb[0].mxu0
    %v233 = vpop.f32.mrb[0].mxu0
    %v234 = vadd.f32 %v62, %v233
    %v235 = vpop.f32.mrb[0].mxu0
    %236 = vmatprep.mubr.bf16.mxu0 0
    %237 = vmatmul.mubr.bf16.gmra.mrb[0].mxu0 %v157
    %v238 = vpop.f32.mrb[0].mxu0
    %v239 = vadd.f32 %v62, %v238
    %v240 = vpop.f32.mrb[0].mxu0
    %v241 = vpop.f32.mrb[0].mxu0
    %v242 = vadd.f32 %v62, %v241
    %v243 = vpop.f32.mrb[0].mxu0
    %244 = vmatprep.mubr.bf16.mxu0 0
    %245 = vmatmul.mubr.bf16.gmra.mrb[0].mxu0 %v160
    %v246 = vpop.f32.mrb[0].mxu0
    %v247 = vadd.f32 %v62, %v246
    %v248 = vpop.f32.mrb[0].mxu0
    %v249 = vpop.f32.mrb[0].mxu0
    %v250 = vadd.f32 %v62, %v249
    %v251 = vpop.f32.mrb[0].mxu0
    %252 = vmatprep.mubr.bf16.mxu0 0
    %253 = vmatmul.mubr.bf16.gmra.mrb[0].mxu0 %v163
    %v254 = vpop.f32.mrb[0].mxu0
    %v255 = vadd.f32 %v62, %v254
    %v256 = vpop.f32.mrb[0].mxu0
    %v257 = vpop.f32.mrb[0].mxu0
    %v258 = vadd.f32 %v62, %v257
    %v259 = vpop.f32.mrb[0].mxu0
    %260 = vmatprep.mubr.bf16.mxu0 0
    %261 = vmatmul.mubr.bf16.gmra.mrb[0].mxu0 %v166
    %v262 = vpop.f32.mrb[0].mxu0
    %v263 = vadd.f32 %v62, %v262
    %v264 = vpop.f32.mrb[0].mxu0
    %v265 = vpop.f32.mrb[0].mxu0
    %v266 = vadd.f32 %v62, %v265
    %v267 = vpop.f32.mrb[0].mxu0
    %268 = vdwg.mxu0
    %v269 = vmax.f32 %v207, 0.0
    %v270 = vmax.f32 %v210, 0.0
    %v271 = vmax.f32 %v215, 0.0
    %v272 = vmax.f32 %v218, 0.0
    %v273 = vmax.f32 %v223, 0.0
    %v274 = vmax.f32 %v226, 0.0
    %v275 = vmax.f32 %v231, 0.0
    %v276 = vmax.f32 %v234, 0.0
    %v277 = vmax.f32 %v239, 0.0
    %v278 = vmax.f32 %v242, 0.0
    %v279 = vmax.f32 %v247, 0.0
    %v280 = vmax.f32 %v250, 0.0
    %v281 = vmax.f32 %v255, 0.0
    %v282 = vmax.f32 %v258, 0.0
    %v283 = vmax.f32 %v263, 0.0
    %v284 = vmax.f32 %v266, 0.0
    %v285 = vpack.c.bf16 %v270, %v269
    %v286 = vpack.c.bf16 %v272, %v271
    %v287 = vpack.c.bf16 %v274, %v273
    %v288 = vpack.c.bf16 %v276, %v275
    %v289 = vpack.c.bf16 %v278, %v277
    %v290 = vpack.c.bf16 %v280, %v279
    %v291 = vpack.c.bf16 %v282, %v281
    %v292 = vpack.c.bf16 %v284, %v283
    %v293 = vld [vmem:[%s3] sm:$0xf]
    %v294 = vld [vmem:[%s3 + $0x4] sm:$0xf]
    %v295 = vld [vmem:[%s3 + $0x8] sm:$0xf]
    %v296 = vld [vmem:[%s3 + $0xc] sm:$0xf]
    %v297 = vld [vmem:[%s3 + $0x10] sm:$0xf]
    %v298 = vld [vmem:[%s3 + $0x14] sm:$0xf]
    %v299 = vld [vmem:[%s3 + $0x18] sm:$0xf]
    %v300 = vld [vmem:[%s3 + $0x1c] sm:$0xf]
    %v301 = vld [vmem:[%s3 + $0x20] sm:$0xf]
    %v302 = vld [vmem:[%s3 + $0x24] sm:$0xf]
    %v303 = vld [vmem:[%s3 + $0x28] sm:$0xf]
    %v304 = vld [vmem:[%s3 + $0x2c] sm:$0xf]
    %v305 = vld [vmem:[%s3 + $0x30] sm:$0xf]
    %v306 = vld [vmem:[%s3 + $0x34] sm:$0xf]
    %v307 = vld [vmem:[%s3 + $0x38] sm:$0xf]
    %v308 = vld [vmem:[%s3 + $0x3c] sm:$0xf]
    %v309 = vld [vmem:[%s4] sm:$0x1]
    %v311 = vlaneseq
    %v312 = vshrl.u32 %v311, 7
    %v313 = vsub.s32 0, %v312
    %v314 = vrot.slane %v309, %v313
    %v332 = vunpack.c.l.b16 %v293
    %v333 = vunpack.c.l.b16 %v294
    %v334 = vunpack.c.l.b16 %v295
    %v335 = vunpack.c.l.b16 %v296
    %v336 = vunpack.c.l.b16 %v297
    %v337 = vunpack.c.l.b16 %v298
    %v338 = vunpack.c.l.b16 %v299
    %v339 = vunpack.c.l.b16 %v300
    %v340 = vunpack.c.l.b16 %v301
    %v341 = vunpack.c.l.b16 %v302
    %v342 = vunpack.c.l.b16 %v303
    %v343 = vunpack.c.l.b16 %v304
    %v344 = vunpack.c.l.b16 %v305
    %v345 = vunpack.c.l.b16 %v306
    %v346 = vunpack.c.l.b16 %v307
    %v347 = vunpack.c.l.b16 %v308
    %v348 = vpack.c.b16 %v333, %v332
    %v349 = vpack.c.b16 %v335, %v334
    %v350 = vpack.c.b16 %v337, %v336
    %v351 = vpack.c.b16 %v339, %v338
    %v352 = vpack.c.b16 %v341, %v340
    %v353 = vpack.c.b16 %v343, %v342
    %v354 = vpack.c.b16 %v345, %v344
    %v355 = vpack.c.b16 %v347, %v346
    %364 = vmatprep.subr.bf16.mxu0 0
    %365 = vmatpush1.bf16.msra.mxu0 %v348
    %366 = vmatprep.subr.bf16.mxu0 0
    %367 = vmatpush1.bf16.msra.mxu0 %v349
    %368 = vmatprep.subr.bf16.mxu0 0
    %369 = vmatpush1.bf16.msra.mxu0 %v350
    %370 = vmatprep.subr.bf16.mxu0 0
    %371 = vmatpush1.bf16.msra.mxu0 %v351
    %372 = vmatprep.subr.bf16.mxu0 0
    %373 = vmatpush1.bf16.msra.mxu0 %v352
    %374 = vmatprep.subr.bf16.mxu0 0
    %375 = vmatpush1.bf16.msra.mxu0 %v353
    %376 = vmatprep.subr.bf16.mxu0 0
    %377 = vmatpush1.bf16.msra.mxu0 %v354
    %378 = vmatprep.subr.bf16.mxu0 0
    %379 = vmatpush1.bf16.msra.mxu0 %v355
    %380 = vmatprep.subr.bf16.mxu0 0
    %381 = vmatpush1.bf16.msra.mxu0 0
    %382 = vmatprep.subr.bf16.mxu0 0
    %383 = vmatpush1.bf16.msra.mxu0 0
    %384 = vmatprep.subr.bf16.mxu0 0
    %385 = vmatpush1.bf16.msra.mxu0 0
    %386 = vmatprep.subr.bf16.mxu0 0
    %387 = vmatpush1.bf16.msra.mxu0 0
    %388 = vmatprep.subr.bf16.mxu0 0
    %389 = vmatpush1.bf16.msra.mxu0 0
    %390 = vmatprep.subr.bf16.mxu0 0
    %391 = vmatpush1.bf16.msra.mxu0 0
    %392 = vmatprep.subr.bf16.mxu0 0
    %393 = vmatpush1.bf16.msra.mxu0 0
    %394 = vmatprep.subr.bf16.mxu0 0
    %395 = vmatpush1.bf16.msra.mxu0 0
    %396 = vmatprep.mubr.bf16.mxu0 0
    %397 = vmatmul.mubr.bf16.gmra.mrb[0].mxu0 %v285
    %v398 = vpop.f32.mrb[0].mxu0
    %v399 = vadd.f32 %v314, %v398
    %v400 = vpop.f32.mrb[0].mxu0
    %v401 = vpop.f32.mrb[0].mxu0
    %v402 = vadd.f32 %v314, %v401
    %v403 = vpop.f32.mrb[0].mxu0
    %404 = vmatprep.mubr.bf16.mxu0 0
    %405 = vmatmul.mubr.bf16.gmra.mrb[0].mxu0 %v286
    %v406 = vpop.f32.mrb[0].mxu0
    %v407 = vadd.f32 %v314, %v406
    %v408 = vpop.f32.mrb[0].mxu0
    %v409 = vpop.f32.mrb[0].mxu0
    %v410 = vadd.f32 %v314, %v409
    %v411 = vpop.f32.mrb[0].mxu0
    %412 = vmatprep.mubr.bf16.mxu0 0
    %413 = vmatmul.mubr.bf16.gmra.mrb[0].mxu0 %v287
    %v414 = vpop.f32.mrb[0].mxu0
    %v415 = vadd.f32 %v314, %v414
    %v416 = vpop.f32.mrb[0].mxu0
    %v417 = vpop.f32.mrb[0].mxu0
    %v418 = vadd.f32 %v314, %v417
    %v419 = vpop.f32.mrb[0].mxu0
    %420 = vmatprep.mubr.bf16.mxu0 0
    %421 = vmatmul.mubr.bf16.gmra.mrb[0].mxu0 %v288
    %v422 = vpop.f32.mrb[0].mxu0
    %v423 = vadd.f32 %v314, %v422
    %v424 = vpop.f32.mrb[0].mxu0
    %v425 = vpop.f32.mrb[0].mxu0
    %v426 = vadd.f32 %v314, %v425
    %v427 = vpop.f32.mrb[0].mxu0
    %428 = vmatprep.mubr.bf16.mxu0 0
    %429 = vmatmul.mubr.bf16.gmra.mrb[0].mxu0 %v289
    %v430 = vpop.f32.mrb[0].mxu0
    %v431 = vadd.f32 %v314, %v430
    %v432 = vpop.f32.mrb[0].mxu0
    %v433 = vpop.f32.mrb[0].mxu0
    %v434 = vadd.f32 %v314, %v433
    %v435 = vpop.f32.mrb[0].mxu0
    %436 = vmatprep.mubr.bf16.mxu0 0
    %437 = vmatmul.mubr.bf16.gmra.mrb[0].mxu0 %v290
    %v438 = vpop.f32.mrb[0].mxu0
    %v439 = vadd.f32 %v314, %v438
    %v440 = vpop.f32.mrb[0].mxu0
    %v441 = vpop.f32.mrb[0].mxu0
    %v442 = vadd.f32 %v314, %v441
    %v443 = vpop.f32.mrb[0].mxu0
    %444 = vmatprep.mubr.bf16.mxu0 0
    %445 = vmatmul.mubr.bf16.gmra.mrb[0].mxu0 %v291
    %v446 = vpop.f32.mrb[0].mxu0
    %v447 = vadd.f32 %v314, %v446
    %v448 = vpop.f32.mrb[0].mxu0
    %v449 = vpop.f32.mrb[0].mxu0
    %v450 = vadd.f32 %v314, %v449
    %v451 = vpop.f32.mrb[0].mxu0
    %452 = vmatprep.mubr.bf16.mxu0 0
    %453 = vmatmul.mubr.bf16.gmra.mrb[0].mxu0 %v292
    %v454 = vpop.f32.mrb[0].mxu0
    %v455 = vadd.f32 %v314, %v454
    %v456 = vpop.f32.mrb[0].mxu0
    %v457 = vpop.f32.mrb[0].mxu0
    %v458 = vadd.f32 %v314, %v457
    %v459 = vpop.f32.mrb[0].mxu0
    %460 = vdwg.mxu0
    %v461 = vmax.f32 %v399, 0.0
    %v462 = vmax.f32 %v402, 0.0
    %v463 = vmax.f32 %v407, 0.0
    %v464 = vmax.f32 %v410, 0.0
    %v465 = vmax.f32 %v415, 0.0
    %v466 = vmax.f32 %v418, 0.0
    %v467 = vmax.f32 %v423, 0.0
    %v468 = vmax.f32 %v426, 0.0
    %v469 = vmax.f32 %v431, 0.0
    %v470 = vmax.f32 %v434, 0.0
    %v471 = vmax.f32 %v439, 0.0
    %v472 = vmax.f32 %v442, 0.0
    %v473 = vmax.f32 %v447, 0.0
    %v474 = vmax.f32 %v450, 0.0
    %v475 = vmax.f32 %v455, 0.0
    %v476 = vmax.f32 %v458, 0.0
    %v477 = vpack.c.bf16 %v462, %v461
    %v478 = vpack.c.bf16 %v464, %v463
    %v479 = vpack.c.bf16 %v466, %v465
    %v480 = vpack.c.bf16 %v468, %v467
    %v481 = vpack.c.bf16 %v470, %v469
    %v482 = vpack.c.bf16 %v472, %v471
    %v483 = vpack.c.bf16 %v474, %v473
    %v484 = vpack.c.bf16 %v476, %v475
    %v485 = vld [vmem:[%s5] sm:$0xf]
    %v486 = vld [vmem:[%s5 + $0x4] sm:$0xf]
    %v487 = vld [vmem:[%s5 + $0x8] sm:$0xf]
    %v488 = vld [vmem:[%s5 + $0xc] sm:$0xf]
    %v489 = vld [vmem:[%s5 + $0x10] sm:$0xf]
    %v490 = vld [vmem:[%s5 + $0x14] sm:$0xf]
    %v491 = vld [vmem:[%s5 + $0x18] sm:$0xf]
    %v492 = vld [vmem:[%s5 + $0x1c] sm:$0xf]
    %v493 = vld [vmem:[%s6] sm:$0x1]
    %v495 = vlaneseq
    %v496 = vshrl.u32 %v495, 7
    %v497 = vsub.s32 0, %v496
    %v498 = vrot.slane %v493, %v497
    %v508 = vunpack.c.l.b16 %v485
    %v509 = vunpack.c.l.b16 %v486
    %v510 = vunpack.c.l.b16 %v487
    %v511 = vunpack.c.l.b16 %v488
    %v512 = vunpack.c.l.b16 %v489
    %v513 = vunpack.c.l.b16 %v490
    %v514 = vunpack.c.l.b16 %v491
    %v515 = vunpack.c.l.b16 %v492
    %v516 = vpack.c.b16 %v509, %v508
    %v517 = vpack.c.b16 %v511, %v510
    %v518 = vpack.c.b16 %v513, %v512
    %v519 = vpack.c.b16 %v515, %v514
    %vm524 = vcmask 523264
    %v526 = vsel %vm524, %v477, 0
    %v529 = vsel %vm524, %v478, 0
    %v532 = vsel %vm524, %v479, 0
    %v535 = vsel %vm524, %v480, 0
    %v538 = vsel %vm524, %v481, 0
    %v541 = vsel %vm524, %v482, 0
    %v544 = vsel %vm524, %v483, 0
    %v547 = vsel %vm524, %v484, 0
    %549 = vmatprep.subr.bf16.mxu0 0
    %550 = vmatpush1.bf16.msra.mxu0 %v516
    %551 = vmatprep.subr.bf16.mxu0 0
    %552 = vmatpush1.bf16.msra.mxu0 %v517
    %553 = vmatprep.subr.bf16.mxu0 0
    %554 = vmatpush1.bf16.msra.mxu0 %v518
    %555 = vmatprep.subr.bf16.mxu0 0
    %556 = vmatpush1.bf16.msra.mxu0 %v519
    %557 = vmatprep.subr.bf16.mxu0 0
    %558 = vmatpush1.bf16.msra.mxu0 0
    %559 = vmatprep.subr.bf16.mxu0 0
    %560 = vmatpush1.bf16.msra.mxu0 0
    %561 = vmatprep.subr.bf16.mxu0 0
    %562 = vmatpush1.bf16.msra.mxu0 0
    %563 = vmatprep.subr.bf16.mxu0 0
    %564 = vmatpush1.bf16.msra.mxu0 0
    %565 = vmatprep.subr.bf16.mxu0 0
    %566 = vmatpush1.bf16.msra.mxu0 0
    %567 = vmatprep.subr.bf16.mxu0 0
    %568 = vmatpush1.bf16.msra.mxu0 0
    %569 = vmatprep.subr.bf16.mxu0 0
    %570 = vmatpush1.bf16.msra.mxu0 0
    %571 = vmatprep.subr.bf16.mxu0 0
    %572 = vmatpush1.bf16.msra.mxu0 0
    %573 = vmatprep.subr.bf16.mxu0 0
    %574 = vmatpush1.bf16.msra.mxu0 0
    %575 = vmatprep.subr.bf16.mxu0 0
    %576 = vmatpush1.bf16.msra.mxu0 0
    %577 = vmatprep.subr.bf16.mxu0 0
    %578 = vmatpush1.bf16.msra.mxu0 0
    %579 = vmatprep.subr.bf16.mxu0 0
    %580 = vmatpush1.bf16.msra.mxu0 0
    %581 = vmatprep.mubr.bf16.mxu0 0
    %582 = vmatmul.mubr.bf16.gmra.mrb[0].mxu0 %v526
    %v583 = vpop.f32.mrb[0].mxu0
    %v584 = vadd.f32 %v498, %v583
    %v585 = vpop.f32.mrb[0].mxu0
    %v586 = vpop.f32.mrb[0].mxu0
    %v587 = vadd.f32 %v498, %v586
    %v588 = vpop.f32.mrb[0].mxu0
    %589 = vmatprep.mubr.bf16.mxu0 0
    %590 = vmatmul.mubr.bf16.gmra.mrb[0].mxu0 %v529
    %v591 = vpop.f32.mrb[0].mxu0
    %v592 = vadd.f32 %v498, %v591
    %v593 = vpop.f32.mrb[0].mxu0
    %v594 = vpop.f32.mrb[0].mxu0
    %v595 = vadd.f32 %v498, %v594
    %v596 = vpop.f32.mrb[0].mxu0
    %597 = vmatprep.mubr.bf16.mxu0 0
    %598 = vmatmul.mubr.bf16.gmra.mrb[0].mxu0 %v532
    %v599 = vpop.f32.mrb[0].mxu0
    %v600 = vadd.f32 %v498, %v599
    %v601 = vpop.f32.mrb[0].mxu0
    %v602 = vpop.f32.mrb[0].mxu0
    %v603 = vadd.f32 %v498, %v602
    %v604 = vpop.f32.mrb[0].mxu0
    %605 = vmatprep.mubr.bf16.mxu0 0
    %606 = vmatmul.mubr.bf16.gmra.mrb[0].mxu0 %v535
    %v607 = vpop.f32.mrb[0].mxu0
    %v608 = vadd.f32 %v498, %v607
    %v609 = vpop.f32.mrb[0].mxu0
    %v610 = vpop.f32.mrb[0].mxu0
    %v611 = vadd.f32 %v498, %v610
    %v612 = vpop.f32.mrb[0].mxu0
    %613 = vmatprep.mubr.bf16.mxu0 0
    %614 = vmatmul.mubr.bf16.gmra.mrb[0].mxu0 %v538
    %v615 = vpop.f32.mrb[0].mxu0
    %v616 = vadd.f32 %v498, %v615
    %v617 = vpop.f32.mrb[0].mxu0
    %v618 = vpop.f32.mrb[0].mxu0
    %v619 = vadd.f32 %v498, %v618
    %v620 = vpop.f32.mrb[0].mxu0
    %621 = vmatprep.mubr.bf16.mxu0 0
    %622 = vmatmul.mubr.bf16.gmra.mrb[0].mxu0 %v541
    %v623 = vpop.f32.mrb[0].mxu0
    %v624 = vadd.f32 %v498, %v623
    %v625 = vpop.f32.mrb[0].mxu0
    %v626 = vpop.f32.mrb[0].mxu0
    %v627 = vadd.f32 %v498, %v626
    %v628 = vpop.f32.mrb[0].mxu0
    %629 = vmatprep.mubr.bf16.mxu0 0
    %630 = vmatmul.mubr.bf16.gmra.mrb[0].mxu0 %v544
    %v631 = vpop.f32.mrb[0].mxu0
    %v632 = vadd.f32 %v498, %v631
    %v633 = vpop.f32.mrb[0].mxu0
    %v634 = vpop.f32.mrb[0].mxu0
    %v635 = vadd.f32 %v498, %v634
    %v636 = vpop.f32.mrb[0].mxu0
    %637 = vmatprep.mubr.bf16.mxu0 0
    %638 = vmatmul.mubr.bf16.gmra.mrb[0].mxu0 %v547
    %v639 = vpop.f32.mrb[0].mxu0
    %v640 = vadd.f32 %v498, %v639
    %v641 = vpop.f32.mrb[0].mxu0
    %v642 = vpop.f32.mrb[0].mxu0
    %v643 = vadd.f32 %v498, %v642
    %v644 = vpop.f32.mrb[0].mxu0
    %645 = vdwg.mxu0
    %646 = vst [vmem:[#allocation2] sm:$0xff] %v584
    %647 = vst [vmem:[#allocation2 + $0x8] sm:$0xff] %v587
    %648 = vst [vmem:[#allocation2 + $0x10] sm:$0xff] %v592
    %649 = vst [vmem:[#allocation2 + $0x18] sm:$0xff] %v595
    %650 = vst [vmem:[#allocation2 + $0x20] sm:$0xff] %v600
    %651 = vst [vmem:[#allocation2 + $0x28] sm:$0xff] %v603
    %652 = vst [vmem:[#allocation2 + $0x30] sm:$0xff] %v608
    %653 = vst [vmem:[#allocation2 + $0x38] sm:$0xff] %v611
    %654 = vst [vmem:[#allocation2 + $0x40] sm:$0xff] %v616
    %655 = vst [vmem:[#allocation2 + $0x48] sm:$0xff] %v619
    %656 = vst [vmem:[#allocation2 + $0x50] sm:$0xff] %v624
    %657 = vst [vmem:[#allocation2 + $0x58] sm:$0xff] %v627
    %658 = vst [vmem:[#allocation2 + $0x60] sm:$0xff] %v632
    %659 = vst [vmem:[#allocation2 + $0x68] sm:$0xff] %v635
    %660 = vst [vmem:[#allocation2 + $0x70] sm:$0xff] %v640
    %661 = vst [vmem:[#allocation2 + $0x78] sm:$0xff] %v643
    // Predicated region
    $region30: #{tpu_custom_call.1} parent=1 // pred_check
      _
    $region31: #{tpu_custom_call.1} parent=1 // pred_check_branch
      %663 = sbr.rel (0) target = $region33
    $region32: #{tpu_custom_call.1} parent=1 // pred_region
      %s665 = ssub.s32 2048, 2048
      %666 = vsyncadd [#allocation3], %s665
      %s667 = sshll.u32 [#allocation2], 4
      %s668 = int_to_ptr.vmem [resolvable:$true] %s667
      %673 = dma.vmem_to_hbm [thread:$0]  %s668, 2048, %s7, [#allocation3], 128, 128, 8
    $region33: #{tpu_custom_call.1} parent=1 // pred_fallthru
      _
    // Predicated region
    $region34: #{tpu_custom_call.1} parent=1 // pred_check
      _
    $region35: #{tpu_custom_call.1} parent=1 // pred_check_branch
      %675 = sbr.rel (0) target = $region37
    $region36: #{tpu_custom_call.1} parent=1 // pred_region
      %676 = dma.done [#allocation3], 2048
    $region37: #{tpu_custom_call.1} parent=1 // pred_fallthru
      _
    %677 = vsyncpa [#allocation3], 1

</llo_original>
